<compile_context>
chip_gen: v5e
topology: v5e:2x2
jax: 0.10.0
libtpu: 0.0.40
codegen_flags: <defaults>
</compile_context>

<pallas_src>
import jax
import jax.numpy as jnp
from jax import lax
from jax.experimental import pallas as pl
from jax.experimental.pallas import tpu as pltpu


def _attention_kernel(z_ref, w1_ref, b1_ref, w2_ref, beta_ref):
    """One tile of TN nodes, fully lane-dense over the node axis.

    z_ref:    (TN, M*D)   per-node rows; the M views concatenated along lanes
    w1_ref:   (M*H, M*D)  block-diagonal stack of W1^T (one block per view)
    b1_ref:   (M*H, 1)    first Linear bias, tiled per view (f32)
    w2_ref:   (M, M*H)    block-diagonal stack of the second Linear weight row (f32)
    beta_ref: (M, TN)     softmax over the view axis; nodes on the 128-lane axis
    """
    x = z_ref[...]                                                     # (TN, M*D)

    # Linear-1, transposed so the node axis lands on lanes (MXU, f32 accumulate):
    #   h[m*H + j, n] = sum_d W1[d, j] * z[n, m, d]
    h = lax.dot_general(w1_ref[...], x, (((1,), (1,)), ((), ())),
                        preferred_element_type=jnp.float32)            # (M*H, TN)
    h = jnp.tanh(h + b1_ref[...])                                      # bias broadcast over lanes

    # Linear-2 (H -> 1) per view as a tiny block-diagonal selection matmul (MXU has slack):
    #   s[m, n] = sum_j w2[j] * h[m*H + j, n]
    s = jnp.dot(w2_ref[...], h, preferred_element_type=jnp.float32)    # (M, TN)

    # Softmax over the M views (sublane axis); nodes stay lane-dense.
    smax = jnp.max(s, axis=0, keepdims=True)
    e = jnp.exp(s - smax)
    denom = jnp.sum(e, axis=0, keepdims=True)
    beta = e * pl.reciprocal(denom, approx=True)   # EUP rcp; rows sum to 1 to ~1e-3
    beta_ref[...] = beta.astype(beta_ref.dtype)


def _choose_tile(n, block_n):
    """Node-tile size: multiple of 128 rows and >=2 grid steps once N is large enough."""
    if n <= 256:
        return n                              # single block: block dims == full array dims
    half = 128 * max(1, pl.cdiv(n, 128) // 2)  # guarantees >= 2 grid steps (v7x: 2 TCs)
    tn = min(block_n, half)
    return max(128, (tn // 128) * 128)


def attention_forward(z, w1, b1, w2, *, block_n=512, compute_dtype=jnp.bfloat16):
    """z: [N, M, D] -> beta: [N, M, 1] float32 (softmax over axis=1).

    compute_dtype controls the HBM stream / MXU input dtype for z and W1 (default bf16;
    matmul accumulation and all tanh/softmax math stay f32).  bf16 quantizes z to ~1e-2
    relative error before the first matmul; pass jnp.float32 for exact-precision callers.
    """
    N, M, D = z.shape
    H = w1.shape[1]
    MH, MD = M * H, M * D

    cdt = jnp.dtype(compute_dtype) if compute_dtype is not None else z.dtype
    tn = _choose_tile(N, block_n)
    n_blocks = pl.cdiv(N, tn)      # ragged tail handled by Pallas OOB blocks (no host-side pad)

    # Host-side layout plumbing: free reshape of z, tiny block-diagonal weight stacks.
    z2 = z.reshape(N, MD).astype(cdt)
    eye_m = jnp.eye(M, dtype=jnp.float32)
    w1_stack = jnp.kron(eye_m, w1.T.astype(jnp.float32)).astype(cdt)        # (M*H, M*D)
    b1_stack = jnp.tile(b1.reshape(-1).astype(jnp.float32), M).reshape(MH, 1)
    w2_stack = jnp.kron(eye_m, w2.reshape(1, H).astype(jnp.float32))        # (M, M*H)

    itemsize = jnp.dtype(cdt).itemsize
    cost = pl.CostEstimate(
        flops=2 * N * MH * MD + 2 * N * M * MH + 6 * N * M,
        transcendentals=N * (MH + M + 1),
        bytes_accessed=N * MD * itemsize + N * M * 4
        + MH * MD * itemsize + MH * 4 + M * MH * 4,
    )

    # VMEM budget: double-buffered z / out tiles + (double-buffered) resident weights, with
    # headroom; clamped so it stays well inside v7x's 64 MiB physical VMEM.
    vmem_need = (2 * tn * MD * itemsize + 2 * M * tn * 4
                 + 2 * (MH * MD * itemsize + MH * 4 + M * MH * 4))
    vmem_limit = int(min(max(2 * vmem_need, 32 * 1024 * 1024), 48 * 1024 * 1024))

    beta_t = pl.pallas_call(
        _attention_kernel,
        out_shape=jax.ShapeDtypeStruct((M, N), jnp.float32),
        grid=(n_blocks,),
        in_specs=[
            pl.BlockSpec((tn, MD), lambda i: (i, 0)),    # z rows for this node tile
            pl.BlockSpec((MH, MD), lambda i: (0, 0)),    # stacked W1 (resident, tiny)
            pl.BlockSpec((MH, 1), lambda i: (0, 0)),     # stacked b1
            pl.BlockSpec((M, MH), lambda i: (0, 0)),     # stacked w2 rows
        ],
        out_specs=pl.BlockSpec((M, tn), lambda i: (0, i)),
        compiler_params=pltpu.CompilerParams(
            dimension_semantics=("parallel",),
            vmem_limit_bytes=vmem_limit,
        ),
        cost_estimate=cost,
    )(z2, w1_stack, b1_stack, w2_stack)

    # (M, N) -> (N, M, 1): output is tiny, so this transpose stays on the host.
    return beta_t.T.reshape(N, M, 1)


def reference_forward(z, w1, b1, w2):
    h = jnp.tanh(jnp.einsum("nmd,dh->nmh", z, w1) + b1.reshape(1, 1, -1))
    s = jnp.einsum("nmh,ho->nmo", h, w2)          # (N, M, 1)
    return jax.nn.softmax(s, axis=1)


if __name__ == "__main__":
    # Small shapes consistent with the module: N nodes, M views, in_size D, hidden H.
    N, M, D, H = 64, 4, 32, 16

    key = jax.random.PRNGKey(0)
    kz, kw1, kb1, kw2 = jax.random.split(key, 4)

    z = jax.random.normal(kz, (N, M, D), dtype=jnp.float32)
    w1 = jax.random.normal(kw1, (D, H), dtype=jnp.float32) * 0.1
    b1 = jax.random.normal(kb1, (1, H), dtype=jnp.float32) * 0.1
    w2 = jax.random.normal(kw2, (H, 1), dtype=jnp.float32) * 0.1

    ref = reference_forward(z, w1, b1, w2)

    # 1) default path: bf16 HBM stream, single node tile (N <= 256).
    beta = jax.block_until_ready(attention_forward(z, w1, b1, w2))
    assert beta.shape == (N, M, 1)
    assert jnp.allclose(beta, ref, atol=2e-2, rtol=2e-2)
    assert jnp.allclose(jnp.sum(beta, axis=1), jnp.ones((N, 1)), atol=5e-3)

    # 2) f32 stream, multi-block grid with a ragged tail (no host-side padding of z).
    N2 = 300
    z_big = jax.random.normal(jax.random.PRNGKey(1), (N2, M, D), dtype=jnp.float32)
    ref2 = reference_forward(z_big, w1, b1, w2)
    beta2 = jax.block_until_ready(
        attention_forward(z_big, w1, b1, w2, compute_dtype=jnp.float32))
    assert beta2.shape == (N2, M, 1)
    assert jnp.allclose(beta2, ref2, atol=5e-3, rtol=5e-3)
    assert jnp.allclose(jnp.sum(beta2, axis=1), jnp.ones((N2, 1)), atol=5e-3)

    print("KERNEL_OK")
</pallas_src>

<mosaic_0001>
module attributes {stable_mosaic.version = 11 : i64} {
  func.func @_attention_kernel(%arg0: i32, %arg1: memref<64x128xbf16, #tpu.memory_space<vmem>>, %arg2: memref<64x128xbf16, #tpu.memory_space<vmem>>, %arg3: memref<64x1xf32, #tpu.memory_space<vmem>>, %arg4: memref<4x64xf32, #tpu.memory_space<vmem>>, %arg5: memref<4x64xf32, #tpu.memory_space<vmem>>) attributes {dimension_semantics = [#tpu.dimension_semantics<parallel>], iteration_bounds = array<i64: 1>, scalar_prefetch = 0 : i64, scratch_operands = 0 : i64, tpu.core_type = #tpu.core_type<tc>, window_params = [{transform_indices = @transform_0, window_bounds = array<i64: 64, 128>}, {pipeline_mode = #tpu.pipeline_mode<synchronous>, transform_indices = @transform_1, window_bounds = array<i64: 64, 128>}, {pipeline_mode = #tpu.pipeline_mode<synchronous>, transform_indices = @transform_2, window_bounds = array<i64: 64, 1>}, {pipeline_mode = #tpu.pipeline_mode<synchronous>, transform_indices = @transform_3, window_bounds = array<i64: 4, 64>}, {transform_indices = @transform_4, window_bounds = array<i64: 4, 64>}]} {
    %c0 = arith.constant 0 : index
    %c0_0 = arith.constant 0 : index
    %0 = vector.load %arg1[%c0, %c0_0] : memref<64x128xbf16, #tpu.memory_space<vmem>>, vector<64x128xbf16>
    %c0_1 = arith.constant 0 : index
    %c0_2 = arith.constant 0 : index
    %1 = vector.load %arg2[%c0_1, %c0_2] : memref<64x128xbf16, #tpu.memory_space<vmem>>, vector<64x128xbf16>
    %cst = arith.constant dense<0.000000e+00> : vector<64x64xf32>
    %2 = tpu.matmul %1, %0, %cst {dimension_numbers = #tpu.dot_dimension_numbers<[1], [1], [0], [0], [0, 0, 1, 0], [], []>} : vector<64x128xbf16>, vector<64x128xbf16>, vector<64x64xf32> -> vector<64x64xf32>
    %c0_3 = arith.constant 0 : index
    %c0_4 = arith.constant 0 : index
    %3 = vector.load %arg3[%c0_3, %c0_4] : memref<64x1xf32, #tpu.memory_space<vmem>>, vector<64x1xf32>
    %4 = vector.broadcast %3 : vector<64x1xf32> to vector<64x64xf32>
    %5 = arith.addf %2, %4 : vector<64x64xf32>
    %6 = math.tanh %5 : vector<64x64xf32>
    %c0_5 = arith.constant 0 : index
    %c0_6 = arith.constant 0 : index
    %7 = vector.load %arg4[%c0_5, %c0_6] : memref<4x64xf32, #tpu.memory_space<vmem>>, vector<4x64xf32>
    %cst_7 = arith.constant dense<0.000000e+00> : vector<4x64xf32>
    %8 = tpu.matmul %7, %6, %cst_7 {dimension_numbers = #tpu.dot_dimension_numbers<[1], [0], [0], [1], [0, 0, 1, 1], [], []>} : vector<4x64xf32>, vector<64x64xf32>, vector<4x64xf32> -> vector<4x64xf32>
    %cst_8 = arith.constant dense<0xFF800000> : vector<64xf32>
    %9 = vector.multi_reduction <maximumf>, %8, %cst_8 [0] : vector<4x64xf32> to vector<64xf32>
    %10 = vector.shape_cast %9 : vector<64xf32> to vector<1x64xf32>
    %11 = vector.broadcast %10 : vector<1x64xf32> to vector<4x64xf32>
    %12 = arith.subf %8, %11 : vector<4x64xf32>
    %13 = math.exp %12 : vector<4x64xf32>
    %cst_9 = arith.constant dense<0.000000e+00> : vector<64xf32>
    %14 = vector.multi_reduction <add>, %13, %cst_9 [0] : vector<4x64xf32> to vector<64xf32>
    %15 = vector.shape_cast %14 : vector<64xf32> to vector<1x64xf32>
    %16 = tpu.reciprocal %15 {approx = true} : vector<1x64xf32> -> vector<1x64xf32>
    %17 = vector.broadcast %16 : vector<1x64xf32> to vector<4x64xf32>
    %18 = arith.mulf %13, %17 : vector<4x64xf32>
    %c0_10 = arith.constant 0 : index
    %c0_11 = arith.constant 0 : index
    %19 = vector.load %arg5[%c0_10, %c0_11] : memref<4x64xf32, #tpu.memory_space<vmem>>, vector<4x64xf32>
    tpu.vector_store %arg5[%c0_10, %c0_11], %18 {strides = array<i32>} : memref<4x64xf32, #tpu.memory_space<vmem>>, vector<4x64xf32>,
    return
  }
  func.func @transform_0(%arg0: i32) -> (i32, i32) {
    %c0_i32 = arith.constant 0 : i32
    %c0_i32_0 = arith.constant 0 : i32
    return %arg0, %c0_i32 : i32, i32
  }
  func.func @transform_1(%arg0: i32) -> (i32, i32) {
    %c0_i32 = arith.constant 0 : i32
    %c0_i32_0 = arith.constant 0 : i32
    %c0_i32_1 = arith.constant 0 : i32
    return %c0_i32, %c0_i32_0 : i32, i32
  }
  func.func @transform_2(%arg0: i32) -> (i32, i32) {
    %c0_i32 = arith.constant 0 : i32
    %c0_i32_0 = arith.constant 0 : i32
    %c0_i32_1 = arith.constant 0 : i32
    return %c0_i32, %c0_i32_0 : i32, i32
  }
  func.func @transform_3(%arg0: i32) -> (i32, i32) {
    %c0_i32 = arith.constant 0 : i32
    %c0_i32_0 = arith.constant 0 : i32
    %c0_i32_1 = arith.constant 0 : i32
    return %c0_i32, %c0_i32_0 : i32, i32
  }
  func.func @transform_4(%arg0: i32) -> (i32, i32) {
    %c0_i32 = arith.constant 0 : i32
    %c0_i32_0 = arith.constant 0 : i32
    return %c0_i32, %arg0 : i32, i32
  }
}

</mosaic_0001>

<llo_original>
// kernel: tpu_custom_call.1
$region0: #{tpu_custom_call.1}
  #allocation0 [shape = 'u32[]', space=smem, size = 0x4, offset = 0x4, fixed_abs, tag = 'smem constant byte address 0x4 - core index']
  #allocation1 [shape = 'u32[72,128]{1,0:T(1,128)}', space=vmem, size = 0x9000, scoped, tag = 'internal scratch']
  %s0 = inlined_call_operand.vmem [shape: bf16[64,128], index: 0, kind: input, shape index: {}]
  %s1 = inlined_call_operand.vmem [shape: bf16[64,128], index: 1, kind: input, shape index: {}]
  %s2 = inlined_call_operand.vmem [shape: f32[64,1], index: 2, kind: input, shape index: {}]
  %s3 = inlined_call_operand.hbm [shape: f32[4,64], index: 3, kind: input, shape index: {}]
  %s4 = inlined_call_operand.hbm [shape: f32[4,64], index: 4, kind: output, shape index: {}]
  %s5 = sld [smem:[#allocation0]]
  $region30: #{tpu_custom_call.1} parent=0
    _
  %s7 = ssub.s32 1, %s5
  %s8 = scalar_select 0, %s7, %s5
  $region1: #{tpu_custom_call.1} parent=0
    #allocation2 [shape = 'u8[2048]{0}', space=vmem, size = 0x800, scoped, tag = 'input window, operand 3, single buffered']
    #allocation3 [shape = 's32[1]{0}', space=sflag, size = 0x4, scoped, tag = 'scoped memory for tpu_custom_call.1']
    #allocation4 [shape = 's32[1]{0}', space=sflag, size = 0x4, scoped, tag = 'scoped memory for tpu_custom_call.1']
    #allocation5 [shape = 'u8[2048]{0}', space=vmem, size = 0x800, scoped, tag = 'output window, operand 0, single buffered']
    %9 = vsyncpa [#allocation3], 0
    %10 = vsyncpa [#allocation4], 0
    // Predicated region
    $region2: #{tpu_custom_call.1} parent=1 // pred_check
      _
    $region3: #{tpu_custom_call.1} parent=1 // pred_check_branch
      %12 = sbr.rel (0) target = $region5
    $region4: #{tpu_custom_call.1} parent=1 // pred_region
      _
    $region5: #{tpu_custom_call.1} parent=1 // pred_fallthru
      _
    // Predicated region
    $region6: #{tpu_custom_call.1} parent=1 // pred_check
      _
    $region7: #{tpu_custom_call.1} parent=1 // pred_check_branch
      %14 = sbr.rel (0) target = $region9
    $region8: #{tpu_custom_call.1} parent=1 // pred_region
      _
    $region9: #{tpu_custom_call.1} parent=1 // pred_fallthru
      _
    // Predicated region
    $region10: #{tpu_custom_call.1} parent=1 // pred_check
      _
    $region11: #{tpu_custom_call.1} parent=1 // pred_check_branch
      %16 = sbr.rel (0) target = $region13
    $region12: #{tpu_custom_call.1} parent=1 // pred_region
      _
    $region13: #{tpu_custom_call.1} parent=1 // pred_fallthru
      _
    // Predicated region
    $region14: #{tpu_custom_call.1} parent=1 // pred_check
      _
    $region15: #{tpu_custom_call.1} parent=1 // pred_check_branch
      %18 = sbr.rel (0) target = $region17
    $region16: #{tpu_custom_call.1} parent=1 // pred_region
      %20 = vsyncadd [#allocation3], 0
      %s22 = sshll.u32 %s3, 4
      %s23 = int_to_ptr.hbm [resolvable:$true] %s22
      %s24 = sshll.u32 [#allocation2], 4
      %s25 = int_to_ptr.vmem [resolvable:$true] %s24
      %27 = dma.hbm_to_vmem [thread:$0]  %s23, 64, %s25, [#allocation3]
    $region17: #{tpu_custom_call.1} parent=1 // pred_fallthru
      _
    // Predicated region
    $region18: #{tpu_custom_call.1} parent=1 // pred_check
      _
    $region19: #{tpu_custom_call.1} parent=1 // pred_check_branch
      %29 = sbr.rel (0) target = $region21
    $region20: #{tpu_custom_call.1} parent=1 // pred_region
      %31 = dma.done [#allocation3], 64
    $region21: #{tpu_custom_call.1} parent=1 // pred_fallthru
      _
    %v33 = vld [vmem:[%s0] sm:$0xf]
    %v34 = vld [vmem:[%s0 + $0x4] sm:$0xf]
    %v35 = vld [vmem:[%s0 + $0x8] sm:$0xf]
    %v36 = vld [vmem:[%s0 + $0xc] sm:$0xf]
    %v37 = vld [vmem:[%s0 + $0x10] sm:$0xf]
    %v38 = vld [vmem:[%s0 + $0x14] sm:$0xf]
    %v39 = vld [vmem:[%s0 + $0x18] sm:$0xf]
    %v40 = vld [vmem:[%s0 + $0x1c] sm:$0xf]
    %v41 = vld [vmem:[%s1] sm:$0xf]
    %v42 = vld [vmem:[%s1 + $0x4] sm:$0xf]
    %v43 = vld [vmem:[%s1 + $0x8] sm:$0xf]
    %v44 = vld [vmem:[%s1 + $0xc] sm:$0xf]
    %v45 = vld [vmem:[%s1 + $0x10] sm:$0xf]
    %v46 = vld [vmem:[%s1 + $0x14] sm:$0xf]
    %v47 = vld [vmem:[%s1 + $0x18] sm:$0xf]
    %v48 = vld [vmem:[%s1 + $0x1c] sm:$0xf]
    %v49 = vld [vmem:[%s2] sm:$0xff]
    %v50 = vld [vmem:[%s2 + $0x8] sm:$0xff]
    %v51 = vld [vmem:[%s2 + $0x10] sm:$0xff]
    %v52 = vld [vmem:[%s2 + $0x18] sm:$0xff]
    %v53 = vld [vmem:[%s2 + $0x20] sm:$0xff]
    %v54 = vld [vmem:[%s2 + $0x28] sm:$0xff]
    %v55 = vld [vmem:[%s2 + $0x30] sm:$0xff]
    %v56 = vld [vmem:[%s2 + $0x38] sm:$0xff]
    %58 = vset.pattern.permute.xlu0 0
    %59 = vperm.xlu0 %58, %v49
    %v60 = vpop.permute.xlu0 %59
    %63 = vset.pattern.permute.xlu0 0
    %64 = vperm.xlu0 %63, %v50
    %v65 = vpop.permute.xlu0 %64
    %68 = vset.pattern.permute.xlu0 0
    %69 = vperm.xlu0 %68, %v51
    %v70 = vpop.permute.xlu0 %69
    %73 = vset.pattern.permute.xlu0 0
    %74 = vperm.xlu0 %73, %v52
    %v75 = vpop.permute.xlu0 %74
    %78 = vset.pattern.permute.xlu0 0
    %79 = vperm.xlu0 %78, %v53
    %v80 = vpop.permute.xlu0 %79
    %83 = vset.pattern.permute.xlu0 0
    %84 = vperm.xlu0 %83, %v54
    %v85 = vpop.permute.xlu0 %84
    %88 = vset.pattern.permute.xlu0 0
    %89 = vperm.xlu0 %88, %v55
    %v90 = vpop.permute.xlu0 %89
    %93 = vset.pattern.permute.xlu0 0
    %94 = vperm.xlu0 %93, %v56
    %v95 = vpop.permute.xlu0 %94
    %v105 = vunpack.c.l.b16 %v41
    %v106 = vunpack.c.l.b16 %v42
    %v107 = vunpack.c.l.b16 %v43
    %v108 = vunpack.c.l.b16 %v44
    %v109 = vunpack.c.l.b16 %v45
    %v110 = vunpack.c.l.b16 %v46
    %v111 = vunpack.c.l.b16 %v47
    %v112 = vunpack.c.l.b16 %v48
    %v113 = vpack.c.b16 %v106, %v105
    %v114 = vpack.c.b16 %v108, %v107
    %v115 = vpack.c.b16 %v110, %v109
    %v116 = vpack.c.b16 %v112, %v111
    %v129 = vunpack.c.l.b16 %v33
    %v130 = vunpack.c.l.b16 %v34
    %v131 = vunpack.c.l.b16 %v35
    %v132 = vunpack.c.l.b16 %v36
    %v133 = vunpack.c.l.b16 %v37
    %v134 = vunpack.c.l.b16 %v38
    %v135 = vunpack.c.l.b16 %v39
    %v136 = vunpack.c.l.b16 %v40
    %v137 = vpack.c.b16 %v130, %v129
    %v138 = vpack.c.b16 %v132, %v131
    %v139 = vpack.c.b16 %v134, %v133
    %v140 = vpack.c.b16 %v136, %v135
    %145 = vmatpush.bf16.xpose.msra.mxu0 0
    %146 = vmatpush.bf16.xpose.msra.mxu0 0
    %147 = vmatpush.bf16.xpose.msra.mxu0 0
    %148 = vmatpush.bf16.xpose.msra.mxu0 0
    %149 = vmatpush.bf16.xpose.msra.mxu0 %v140
    %150 = vmatpush.bf16.xpose.msra.mxu0 %v139
    %151 = vmatpush.bf16.xpose.msra.mxu0 %v138
    %152 = vmatpush.bf16.xpose.msra.mxu0 %v137
    %153 = vmatmul.bf16.gmra.mxu0 %v113
    %v154 = vpop.f32.mrf.mxu0
    %v155 = vadd.f32 %v60, %v154
    %v156 = vpop.f32.mrf.mxu0
    %v157 = vadd.f32 %v65, %v156
    %158 = vmatmul.bf16.gmra.mxu0 %v114
    %v159 = vpop.f32.mrf.mxu0
    %v160 = vadd.f32 %v70, %v159
    %v161 = vpop.f32.mrf.mxu0
    %v162 = vadd.f32 %v75, %v161
    %163 = vmatmul.bf16.gmra.mxu0 %v115
    %v164 = vpop.f32.mrf.mxu0
    %v165 = vadd.f32 %v80, %v164
    %v166 = vpop.f32.mrf.mxu0
    %v167 = vadd.f32 %v85, %v166
    %168 = vmatmul.bf16.gmra.mxu0 %v116
    %v169 = vpop.f32.mrf.mxu0
    %v170 = vadd.f32 %v90, %v169
    %v171 = vpop.f32.mrf.mxu0
    %v172 = vadd.f32 %v95, %v171
    %173 = vdwg.mxu0
    %v174 = vtanh.pop %v155
    %v175 = vtanh.pop %v157
    %v176 = vtanh.pop %v160
    %v177 = vtanh.pop %v162
    %v178 = vtanh.pop %v165
    %v179 = vtanh.pop %v167
    %v180 = vtanh.pop %v170
    %v181 = vtanh.pop %v172
    %v182 = vld [vmem:[#allocation2] sm:$0xf]
    %vm183 = vcmask 523264
    %v185 = vsel %vm183, %v182, 0
    %187 = vmatpush.msra.mxu0 0.0
    %188 = vmatpush.msra.mxu0 0.0
    %189 = vmatpush.msra.mxu0 0.0
    %190 = vmatpush.msra.mxu0 0.0
    %191 = vmatpush.msra.mxu0 0.0
    %192 = vmatpush.msra.mxu0 0.0
    %193 = vmatpush.msra.mxu0 0.0
    %194 = vmatpush.msra.mxu0 0.0
    %195 = vmatpush.msra.mxu0 %v181
    %196 = vmatpush.msra.mxu0 %v180
    %197 = vmatpush.msra.mxu0 %v179
    %198 = vmatpush.msra.mxu0 %v178
    %199 = vmatpush.msra.mxu0 %v177
    %200 = vmatpush.msra.mxu0 %v176
    %201 = vmatpush.msra.mxu0 %v175
    %202 = vmatpush.msra.mxu0 %v174
    %203 = vmatmul.f32.gmra.mxu0 %v185
    %v204 = vpop.f32.mrf.mxu0
    %v205 = vadd.f32 0.0, %v204
    %206 = vdwg.mxu0
    %vm207 = vcmask 519168
    %v208 = vsel %vm207, %v205, -inf
    %v209 = vrot.slane %v208, 4
    %v210 = vmax.f32 %v208, %v209
    %v211 = vrot.slane %v210, 2
    %v212 = vmax.f32 %v210, %v211
    %v213 = vrot.slane %v212, 1
    %v214 = vmax.f32 %v212, %v213
    %v215 = vsub.f32 %v205, %v214
    %v216 = vmul.f32 %v215, 1.442695
    %v217 = vpow.pop %v216
    %v218 = vsel %vm207, %v217, 0.0
    %v219 = vrot.slane %v218, 4
    %v220 = vadd.f32 %v218, %v219
    %v221 = vrot.slane %v220, 2
    %v222 = vadd.f32 %v220, %v221
    %v223 = vrot.slane %v222, 1
    %v224 = vadd.f32 %v222, %v223
    %v225 = vrcp.pop %v224
    %v226 = vmul.f32 %v217, %v225
    %227 = vst.msk [vmem:[#allocation5] sm:$0xf] %vm207, %v226
    // Predicated region
    $region22: #{tpu_custom_call.1} parent=1 // pred_check
      _
    $region23: #{tpu_custom_call.1} parent=1 // pred_check_branch
      %229 = sbr.rel (0) target = $region25
    $region24: #{tpu_custom_call.1} parent=1 // pred_region
      %231 = vsyncadd [#allocation4], 0
      %s233 = sshll.u32 [#allocation5], 4
      %s234 = int_to_ptr.vmem [resolvable:$true] %s233
      %s235 = sshll.u32 %s4, 4
      %s236 = int_to_ptr.hbm [resolvable:$true] %s235
      %238 = dma.vmem_to_hbm [thread:$0]  %s234, 64, %s236, [#allocation4]
    $region25: #{tpu_custom_call.1} parent=1 // pred_fallthru
      _
    // Predicated region
    $region26: #{tpu_custom_call.1} parent=1 // pred_check
      _
    $region27: #{tpu_custom_call.1} parent=1 // pred_check_branch
      %240 = sbr.rel (0) target = $region29
    $region28: #{tpu_custom_call.1} parent=1 // pred_region
      %242 = dma.done [#allocation4], 64
    $region29: #{tpu_custom_call.1} parent=1 // pred_fallthru
      _
    %243 = vsyncpa [#allocation3], 1
    %244 = vsyncpa [#allocation4], 1

</llo_original>
